<compile_context>
chip_gen: v7x
topology: tpu7x:2x2x1
jax: 0.10.0
libtpu: 0.0.40
codegen_flags: <defaults>
</compile_context>

<pallas_src>
import functools

import jax
import jax.numpy as jnp
from jax import lax
from jax.experimental import pallas as pl
from jax.experimental.pallas import tpu as pltpu

LN_EPS = 1e-5  # PyTorch nn.LayerNorm default


# ---------------------------------------------------------------------------
# Kernel
# ---------------------------------------------------------------------------
def sublayer_kernel(x_ref, w1_ref, b1_ref, w2_ref, b2_ref, g_ref, beta_ref,
                    o_ref, acc_ref):
    """Grid = (row tiles, H tiles). acc_ref: (tile_m, D) f32 accumulator."""
    k = pl.program_id(1)

    @pl.when(k == 0)
    def _init():
        acc_ref[...] = jnp.zeros_like(acc_ref)

    # Partial FeedForward for this slice of the hidden dimension.
    # ReLU acts elementwise over H, so summing relu(x@W1[:,k] + b1[k]) @ W2[k,:]
    # over k-tiles reproduces the full FF exactly.
    x_bf = x_ref[...].astype(jnp.bfloat16)                      # bf16 MXU inputs
    h = jnp.dot(x_bf, w1_ref[...], preferred_element_type=jnp.float32)
    h = jnp.maximum(h + b1_ref[...], 0.0)                       # bias + ReLU in f32
    acc_ref[...] += jnp.dot(h.astype(jnp.bfloat16), w2_ref[...],
                            preferred_element_type=jnp.float32)

    @pl.when(k == pl.num_programs(1) - 1)
    def _finalize():
        # Residual + LayerNorm, all statistics in f32.
        z = x_ref[...] + acc_ref[...] + b2_ref[...]
        mean = jnp.mean(z, axis=-1, keepdims=True)
        cen = z - mean
        var = jnp.mean(cen * cen, axis=-1, keepdims=True)
        zn = cen * lax.rsqrt(var + LN_EPS)
        o_ref[...] = (zn * g_ref[...] + beta_ref[...]).astype(o_ref.dtype)


# ---------------------------------------------------------------------------
# Tile sizing helpers (pure Python, run at trace time on static shapes)
# ---------------------------------------------------------------------------
def _round_up(v, m):
    return ((v + m - 1) // m) * m


def _vmem_capacity_bytes():
    try:
        return int(pltpu.get_tpu_info().vmem_capacity_bytes)
    except Exception:
        return 64 * 1024 * 1024  # conservative default (v7x per-TensorCore VMEM)


def _pick_tile_h(H, hint):
    """Largest H-tile that is a multiple of 128, divides H and is <= hint;
    falls back to the full H (fully resident weight tiles)."""
    if H <= hint:
        return H
    t = (hint // 128) * 128
    while t >= 128:
        if H % t == 0:
            return t
        t -= 128
    return H


def _choose_tiles(M, D, H, tm_hint, th_hint, budget_bytes):
    tm = min(_round_up(M, 8), _round_up(tm_hint, 8))
    th = _pick_tile_h(H, th_hint)

    def usage(tm_, th_):
        f32, bf16 = 4, 2
        return (4 * tm_ * D * f32              # x + out tiles (double-buffered)
                + tm_ * D * f32                # f32 accumulator scratch
                + 2 * D * th_ * bf16           # W1 tile (double-buffered, bf16)
                + 2 * th_ * D * bf16           # W2 tile (double-buffered, bf16)
                + 2 * th_ * f32 + 6 * D * f32  # biases / LN params
                + tm_ * th_ * f32)             # live (tile_m, tile_h) activation

    while usage(tm, th) > budget_bytes:
        if tm > 64:
            tm = max(8, (tm // 2 // 8) * 8)
        elif th > 128:
            new_th = _pick_tile_h(H, th // 2)
            if new_th < th:
                th = new_th
            elif tm > 8:
                tm = max(8, (tm // 2 // 8) * 8)
            else:
                break
        elif tm > 8:
            tm = max(8, (tm // 2 // 8) * 8)
        else:
            break
    return tm, th


# ---------------------------------------------------------------------------
# Wrapper
# ---------------------------------------------------------------------------
@functools.partial(jax.jit, static_argnames=("tile_m", "tile_h"))
def sublayer_forward(x, w1, b1, w2, b2, gamma, beta, *, tile_m=256, tile_h=512):
    """x: (B, S, D) f32; w1: (D, H); w2: (H, D). Returns (B, S, D) f32."""
    B, S, D = x.shape
    H = w1.shape[1]
    M = B * S

    vmem_cap = _vmem_capacity_bytes()
    vmem_limit = min(int(vmem_cap * 0.9), 120 * 1024 * 1024)
    tm, th = _choose_tiles(M, D, H, tile_m, tile_h, int(vmem_limit * 0.8))

    M_pad = _round_up(M, tm)
    grid_m = M_pad // tm
    grid_h = H // th  # th divides H by construction

    x2 = x.reshape(M, D)
    if M_pad != M:
        x2 = jnp.pad(x2, ((0, M_pad - M), (0, 0)))

    # bf16 weights halve HBM traffic and feed the MXU at full rate;
    # biases / LN params stay f32 (they are added after f32 accumulation).
    w1b = w1.astype(jnp.bfloat16)
    w2b = w2.astype(jnp.bfloat16)
    b1_2 = b1.reshape(1, H).astype(jnp.float32)
    b2_2 = b2.reshape(1, D).astype(jnp.float32)
    g_2 = gamma.reshape(1, D).astype(jnp.float32)
    be_2 = beta.reshape(1, D).astype(jnp.float32)

    cost = pl.CostEstimate(
        flops=int(4 * M_pad * D * H + 10 * M_pad * D),
        transcendentals=int(M_pad),
        bytes_accessed=int(2 * M_pad * D * 4           # x in + out
                           + grid_m * 2 * D * H * 2    # bf16 weights (re-streamed per row tile)
                           + (H + 3 * D) * 4),
    )

    out2 = pl.pallas_call(
        sublayer_kernel,
        out_shape=jax.ShapeDtypeStruct((M_pad, D), x.dtype),
        grid_spec=pltpu.PrefetchScalarGridSpec(
            num_scalar_prefetch=0,
            grid=(grid_m, grid_h),
            in_specs=[
                pl.BlockSpec((tm, D), lambda i, k: (i, 0)),    # x rows (resident across k)
                pl.BlockSpec((D, th), lambda i, k: (0, k)),    # W1 column tile (bf16)
                pl.BlockSpec((1, th), lambda i, k: (0, k)),    # b1 tile
                pl.BlockSpec((th, D), lambda i, k: (k, 0)),    # W2 row tile (bf16)
                pl.BlockSpec((1, D), lambda i, k: (0, 0)),     # b2
                pl.BlockSpec((1, D), lambda i, k: (0, 0)),     # gamma
                pl.BlockSpec((1, D), lambda i, k: (0, 0)),     # beta
            ],
            out_specs=pl.BlockSpec((tm, D), lambda i, k: (i, 0)),
            scratch_shapes=[pltpu.VMEM((tm, D), jnp.float32)],
        ),
        compiler_params=pltpu.CompilerParams(
            dimension_semantics=("parallel", "arbitrary"),
            vmem_limit_bytes=vmem_limit,
        ),
        cost_estimate=cost,
    )(x2, w1b, b1_2, w2b, b2_2, g_2, be_2)

    return out2[:M].reshape(B, S, D)


# ---------------------------------------------------------------------------
# Reference (pure JAX)
# ---------------------------------------------------------------------------
def reference(x, w1, b1, w2, b2, gamma, beta, *, matmul_dtype=jnp.float32):
    h = jnp.dot(x.astype(matmul_dtype), w1.astype(matmul_dtype),
                preferred_element_type=jnp.float32) + b1
    h = jnp.maximum(h, 0.0)
    y = jnp.dot(h.astype(matmul_dtype), w2.astype(matmul_dtype),
                preferred_element_type=jnp.float32) + b2
    z = x + y
    mean = jnp.mean(z, axis=-1, keepdims=True)
    var = jnp.mean((z - mean) ** 2, axis=-1, keepdims=True)
    return (z - mean) / jnp.sqrt(var + LN_EPS) * gamma + beta


if __name__ == "__main__":
    # Small demo shapes: d_model = 128 keeps the output lane-dense.
    B, S, D, H = 2, 8, 128, 256  # batch, seq, d_model, ff hidden

    key = jax.random.PRNGKey(0)
    kx, k1, k2, k3, k4 = jax.random.split(key, 5)

    x = jax.random.normal(kx, (B, S, D), dtype=jnp.float32)
    w1 = jax.random.normal(k1, (D, H), dtype=jnp.float32) * (1.0 / jnp.sqrt(D))
    b1 = jax.random.normal(k2, (H,), dtype=jnp.float32) * 0.01
    w2 = jax.random.normal(k3, (H, D), dtype=jnp.float32) * (1.0 / jnp.sqrt(H))
    b2 = jax.random.normal(k4, (D,), dtype=jnp.float32) * 0.01
    gamma = jnp.ones((D,), dtype=jnp.float32)
    beta = jnp.zeros((D,), dtype=jnp.float32)

    out = sublayer_forward(x, w1, b1, w2, b2, gamma, beta)
    out = jax.block_until_ready(out)
    assert out.shape == (B, S, D)
    assert bool(jnp.all(jnp.isfinite(out)))

    # Same mixed precision as the kernel (bf16 matmul inputs, f32 LN): tight check.
    ref_bf = reference(x, w1, b1, w2, b2, gamma, beta, matmul_dtype=jnp.bfloat16)
    assert jnp.allclose(out, ref_bf, atol=5e-3, rtol=5e-3), \
        float(jnp.max(jnp.abs(out - ref_bf)))

    # Full-f32 PyTorch-equivalent reference: loose check (bf16 MXU operands).
    ref_f32 = reference(x, w1, b1, w2, b2, gamma, beta, matmul_dtype=jnp.float32)
    assert jnp.allclose(out, ref_f32, atol=5e-2, rtol=5e-2), \
        float(jnp.max(jnp.abs(out - ref_f32)))

    print("KERNEL_OK")
</pallas_src>

<mosaic_0001>
module attributes {stable_mosaic.version = 11 : i64} {
  func.func @sublayer_kernel(%arg0: i32, %arg1: i32, %arg2: memref<16x128xf32, #tpu.memory_space<vmem>>, %arg3: memref<128x256xbf16, #tpu.memory_space<vmem>>, %arg4: memref<1x256xf32, #tpu.memory_space<vmem>>, %arg5: memref<256x128xbf16, #tpu.memory_space<vmem>>, %arg6: memref<1x128xf32, #tpu.memory_space<vmem>>, %arg7: memref<1x128xf32, #tpu.memory_space<vmem>>, %arg8: memref<1x128xf32, #tpu.memory_space<vmem>>, %arg9: memref<16x128xf32, #tpu.memory_space<vmem>>, %arg10: memref<16x128xf32, #tpu.memory_space<vmem>>) attributes {dimension_semantics = [#tpu.dimension_semantics<parallel>, #tpu.dimension_semantics<arbitrary>], iteration_bounds = array<i64: 1, 1>, scalar_prefetch = 0 : i64, scratch_operands = 1 : i64, tpu.core_type = #tpu.core_type<tc>, window_params = [{transform_indices = @transform_0, window_bounds = array<i64: 16, 128>}, {transform_indices = @transform_1, window_bounds = array<i64: 128, 256>}, {transform_indices = @transform_2, window_bounds = array<i64: 1, 256>}, {transform_indices = @transform_3, window_bounds = array<i64: 256, 128>}, {pipeline_mode = #tpu.pipeline_mode<synchronous>, transform_indices = @transform_4, window_bounds = array<i64: 1, 128>}, {pipeline_mode = #tpu.pipeline_mode<synchronous>, transform_indices = @transform_5, window_bounds = array<i64: 1, 128>}, {pipeline_mode = #tpu.pipeline_mode<synchronous>, transform_indices = @transform_6, window_bounds = array<i64: 1, 128>}, {transform_indices = @transform_7, window_bounds = array<i64: 16, 128>}]} {
    %c0_i32 = arith.constant 0 : i32
    %0 = arith.cmpi eq, %arg1, %c0_i32 : i32
    %1 = arith.extui %0 : i1 to i32
    %c0_i32_0 = arith.constant 0 : i32
    %2 = arith.cmpi ne, %1, %c0_i32_0 : i32
    scf.if %2 {
      %cst_16 = arith.constant 0.000000e+00 : f32
      %21 = vector.broadcast %cst_16 : f32 to vector<16x128xf32>
      %c0_17 = arith.constant 0 : index
      %c0_18 = arith.constant 0 : index
      %22 = vector.load %arg10[%c0_17, %c0_18] : memref<16x128xf32, #tpu.memory_space<vmem>>, vector<16x128xf32>
      tpu.vector_store %arg10[%c0_17, %c0_18], %21 {strides = array<i32>} : memref<16x128xf32, #tpu.memory_space<vmem>>, vector<16x128xf32>,
    } else {
    }
    %c0 = arith.constant 0 : index
    %c0_1 = arith.constant 0 : index
    %3 = vector.load %arg2[%c0, %c0_1] : memref<16x128xf32, #tpu.memory_space<vmem>>, vector<16x128xf32>
    %4 = arith.truncf %3 : vector<16x128xf32> to vector<16x128xbf16>
    %c0_2 = arith.constant 0 : index
    %c0_3 = arith.constant 0 : index
    %5 = vector.load %arg3[%c0_2, %c0_3] : memref<128x256xbf16, #tpu.memory_space<vmem>>, vector<128x256xbf16>
    %cst = arith.constant dense<0.000000e+00> : vector<16x256xf32>
    %6 = tpu.matmul %4, %5, %cst {dimension_numbers = #tpu.dot_dimension_numbers<[1], [0], [0], [1], [0, 0, 1, 1], [], []>} : vector<16x128xbf16>, vector<128x256xbf16>, vector<16x256xf32> -> vector<16x256xf32>
    %c0_4 = arith.constant 0 : index
    %c0_5 = arith.constant 0 : index
    %7 = vector.load %arg4[%c0_4, %c0_5] : memref<1x256xf32, #tpu.memory_space<vmem>>, vector<1x256xf32>
    %8 = vector.broadcast %7 : vector<1x256xf32> to vector<16x256xf32>
    %9 = arith.addf %6, %8 : vector<16x256xf32>
    %cst_6 = arith.constant 0.000000e+00 : f32
    %10 = vector.broadcast %cst_6 : f32 to vector<16x256xf32>
    %11 = arith.maximumf %9, %10 : vector<16x256xf32>
    %c0_7 = arith.constant 0 : index
    %c0_8 = arith.constant 0 : index
    %12 = vector.load %arg10[%c0_7, %c0_8] : memref<16x128xf32, #tpu.memory_space<vmem>>, vector<16x128xf32>
    %13 = arith.truncf %11 : vector<16x256xf32> to vector<16x256xbf16>
    %c0_9 = arith.constant 0 : index
    %c0_10 = arith.constant 0 : index
    %14 = vector.load %arg5[%c0_9, %c0_10] : memref<256x128xbf16, #tpu.memory_space<vmem>>, vector<256x128xbf16>
    %cst_11 = arith.constant dense<0.000000e+00> : vector<16x128xf32>
    %15 = tpu.matmul %13, %14, %cst_11 {dimension_numbers = #tpu.dot_dimension_numbers<[1], [0], [0], [1], [0, 0, 1, 1], [], []>} : vector<16x256xbf16>, vector<256x128xbf16>, vector<16x128xf32> -> vector<16x128xf32>
    %16 = arith.addf %12, %15 : vector<16x128xf32>
    %c0_12 = arith.constant 0 : index
    %c0_13 = arith.constant 0 : index
    %17 = vector.load %arg10[%c0_12, %c0_13] : memref<16x128xf32, #tpu.memory_space<vmem>>, vector<16x128xf32>
    tpu.vector_store %arg10[%c0_12, %c0_13], %16 {strides = array<i32>} : memref<16x128xf32, #tpu.memory_space<vmem>>, vector<16x128xf32>,
    %c0_i32_14 = arith.constant 0 : i32
    %18 = arith.cmpi eq, %arg1, %c0_i32_14 : i32
    %19 = arith.extui %18 : i1 to i32
    %c0_i32_15 = arith.constant 0 : i32
    %20 = arith.cmpi ne, %19, %c0_i32_15 : i32
    scf.if %20 {
      %c0_16 = arith.constant 0 : index
      %c0_17 = arith.constant 0 : index
      %21 = vector.load %arg2[%c0_16, %c0_17] : memref<16x128xf32, #tpu.memory_space<vmem>>, vector<16x128xf32>
      %c0_18 = arith.constant 0 : index
      %c0_19 = arith.constant 0 : index
      %22 = vector.load %arg10[%c0_18, %c0_19] : memref<16x128xf32, #tpu.memory_space<vmem>>, vector<16x128xf32>
      %23 = arith.addf %21, %22 : vector<16x128xf32>
      %c0_20 = arith.constant 0 : index
      %c0_21 = arith.constant 0 : index
      %24 = vector.load %arg6[%c0_20, %c0_21] : memref<1x128xf32, #tpu.memory_space<vmem>>, vector<1x128xf32>
      %25 = vector.broadcast %24 : vector<1x128xf32> to vector<16x128xf32>
      %26 = arith.addf %23, %25 : vector<16x128xf32>
      %cst_22 = arith.constant dense<0.000000e+00> : vector<16xf32>
      %27 = vector.multi_reduction <add>, %26, %cst_22 [1] : vector<16x128xf32> to vector<16xf32>
      %28 = vector.shape_cast %27 : vector<16xf32> to vector<16x1xf32>
      %cst_23 = arith.constant 1.280000e+02 : f32
      %29 = vector.broadcast %cst_23 : f32 to vector<16x1xf32>
      %30 = arith.divf %28, %29 : vector<16x1xf32>
      %31 = vector.broadcast %30 : vector<16x1xf32> to vector<16x128xf32>
      %32 = arith.subf %26, %31 : vector<16x128xf32>
      %33 = arith.mulf %32, %32 : vector<16x128xf32>
      %cst_24 = arith.constant dense<0.000000e+00> : vector<16xf32>
      %34 = vector.multi_reduction <add>, %33, %cst_24 [1] : vector<16x128xf32> to vector<16xf32>
      %35 = vector.shape_cast %34 : vector<16xf32> to vector<16x1xf32>
      %cst_25 = arith.constant 1.280000e+02 : f32
      %36 = vector.broadcast %cst_25 : f32 to vector<16x1xf32>
      %37 = arith.divf %35, %36 : vector<16x1xf32>
      %cst_26 = arith.constant 9.99999974E-6 : f32
      %38 = vector.broadcast %cst_26 : f32 to vector<16x1xf32>
      %39 = arith.addf %37, %38 : vector<16x1xf32>
      %40 = math.rsqrt %39 : vector<16x1xf32>
      %41 = vector.broadcast %40 : vector<16x1xf32> to vector<16x128xf32>
      %42 = arith.mulf %32, %41 : vector<16x128xf32>
      %c0_27 = arith.constant 0 : index
      %c0_28 = arith.constant 0 : index
      %43 = vector.load %arg7[%c0_27, %c0_28] : memref<1x128xf32, #tpu.memory_space<vmem>>, vector<1x128xf32>
      %44 = vector.broadcast %43 : vector<1x128xf32> to vector<16x128xf32>
      %45 = arith.mulf %42, %44 : vector<16x128xf32>
      %c0_29 = arith.constant 0 : index
      %c0_30 = arith.constant 0 : index
      %46 = vector.load %arg8[%c0_29, %c0_30] : memref<1x128xf32, #tpu.memory_space<vmem>>, vector<1x128xf32>
      %47 = vector.broadcast %46 : vector<1x128xf32> to vector<16x128xf32>
      %48 = arith.addf %45, %47 : vector<16x128xf32>
      %c0_31 = arith.constant 0 : index
      %c0_32 = arith.constant 0 : index
      %49 = vector.load %arg9[%c0_31, %c0_32] : memref<16x128xf32, #tpu.memory_space<vmem>>, vector<16x128xf32>
      tpu.vector_store %arg9[%c0_31, %c0_32], %48 {strides = array<i32>} : memref<16x128xf32, #tpu.memory_space<vmem>>, vector<16x128xf32>,
    } else {
    }
    return
  }
  func.func @transform_0(%arg0: i32, %arg1: i32) -> (i32, i32) {
    %c0_i32 = arith.constant 0 : i32
    %c0_i32_0 = arith.constant 0 : i32
    return %arg0, %c0_i32 : i32, i32
  }
  func.func @transform_1(%arg0: i32, %arg1: i32) -> (i32, i32) {
    %c0_i32 = arith.constant 0 : i32
    %c0_i32_0 = arith.constant 0 : i32
    return %c0_i32, %arg1 : i32, i32
  }
  func.func @transform_2(%arg0: i32, %arg1: i32) -> (i32, i32) {
    %c0_i32 = arith.constant 0 : i32
    %c0_i32_0 = arith.constant 0 : i32
    return %c0_i32, %arg1 : i32, i32
  }
  func.func @transform_3(%arg0: i32, %arg1: i32) -> (i32, i32) {
    %c0_i32 = arith.constant 0 : i32
    %c0_i32_0 = arith.constant 0 : i32
    return %arg1, %c0_i32 : i32, i32
  }
  func.func @transform_4(%arg0: i32, %arg1: i32) -> (i32, i32) {
    %c0_i32 = arith.constant 0 : i32
    %c0_i32_0 = arith.constant 0 : i32
    %c0_i32_1 = arith.constant 0 : i32
    return %c0_i32, %c0_i32_0 : i32, i32
  }
  func.func @transform_5(%arg0: i32, %arg1: i32) -> (i32, i32) {
    %c0_i32 = arith.constant 0 : i32
    %c0_i32_0 = arith.constant 0 : i32
    %c0_i32_1 = arith.constant 0 : i32
    return %c0_i32, %c0_i32_0 : i32, i32
  }
  func.func @transform_6(%arg0: i32, %arg1: i32) -> (i32, i32) {
    %c0_i32 = arith.constant 0 : i32
    %c0_i32_0 = arith.constant 0 : i32
    %c0_i32_1 = arith.constant 0 : i32
    return %c0_i32, %c0_i32_0 : i32, i32
  }
  func.func @transform_7(%arg0: i32, %arg1: i32) -> (i32, i32) {
    %c0_i32 = arith.constant 0 : i32
    %c0_i32_0 = arith.constant 0 : i32
    return %arg0, %c0_i32 : i32, i32
  }
}

</mosaic_0001>

<llo_original>
// kernel: sublayer_forward.1
$region0: #{sublayer_forward.1}
  #allocation0 [shape = 'u32[]', space=smem, size = 0x4, offset = 0x4, fixed_abs, tag = 'smem constant byte address 0x4 - core index']
  #allocation1 [shape = 'u32[144,128]{1,0:T(1,128)}', space=vmem, size = 0x12000, scoped, tag = 'internal scratch']
  #allocation2 [shape = 'f32[16,128]{1,0:T(8,128)}', space=vmem, size = 0x2000, scoped, tag = 'scratch operand']
  %s0 = inlined_call_operand.vmem [shape: f32[16,128], index: 0, kind: input, shape index: {}]
  %s1 = inlined_call_operand.vmem [shape: bf16[128,256], index: 1, kind: input, shape index: {}]
  %s2 = inlined_call_operand.vmem [shape: f32[1,256], index: 2, kind: input, shape index: {}]
  %s3 = inlined_call_operand.vmem [shape: bf16[256,128], index: 3, kind: input, shape index: {}]
  %s4 = inlined_call_operand.vmem [shape: f32[1,128], index: 4, kind: input, shape index: {}]
  %s5 = inlined_call_operand.vmem [shape: f32[1,128], index: 5, kind: input, shape index: {}]
  %s6 = inlined_call_operand.vmem [shape: f32[1,128], index: 6, kind: input, shape index: {}]
  %s7 = inlined_call_operand.hbm [shape: f32[16,128], index: 7, kind: output, shape index: {}]
  %s8 = sld [smem:[#allocation0]]
  $region46: #{sublayer_forward.1} parent=0
    _
  %s10 = ssub.s32 1, %s8
  %s11 = scalar_select 0, %s10, %s8
  $region1: #{sublayer_forward.1} parent=0
    #allocation3 [shape = 'u8[8192]{0}', space=vmem, size = 0x2000, scoped, tag = 'output window, operand 0, single buffered']
    #allocation4 [shape = 's32[1]{0}', space=sflag, size = 0x4, scoped, tag = 'scoped memory for sublayer_forward.1']
    %12 = vsyncpa [#allocation4], 0
    // Predicated region
    $region2: #{sublayer_forward.1} parent=1 // pred_check
      _
    $region3: #{sublayer_forward.1} parent=1 // pred_check_branch
      %14 = sbr.rel (0) target = $region5
    $region4: #{sublayer_forward.1} parent=1 // pred_region
      _
    $region5: #{sublayer_forward.1} parent=1 // pred_fallthru
      _
    // Predicated region
    $region6: #{sublayer_forward.1} parent=1 // pred_check
      _
    $region7: #{sublayer_forward.1} parent=1 // pred_check_branch
      %16 = sbr.rel (0) target = $region9
    $region8: #{sublayer_forward.1} parent=1 // pred_region
      _
    $region9: #{sublayer_forward.1} parent=1 // pred_fallthru
      _
    // Predicated region
    $region10: #{sublayer_forward.1} parent=1 // pred_check
      _
    $region11: #{sublayer_forward.1} parent=1 // pred_check_branch
      %18 = sbr.rel (0) target = $region13
    $region12: #{sublayer_forward.1} parent=1 // pred_region
      _
    $region13: #{sublayer_forward.1} parent=1 // pred_fallthru
      _
    // Predicated region
    $region14: #{sublayer_forward.1} parent=1 // pred_check
      _
    $region15: #{sublayer_forward.1} parent=1 // pred_check_branch
      %20 = sbr.rel (0) target = $region17
    $region16: #{sublayer_forward.1} parent=1 // pred_region
      _
    $region17: #{sublayer_forward.1} parent=1 // pred_fallthru
      _
    // Predicated region
    $region18: #{sublayer_forward.1} parent=1 // pred_check
      _
    $region19: #{sublayer_forward.1} parent=1 // pred_check_branch
      %22 = sbr.rel (0) target = $region21
    $region20: #{sublayer_forward.1} parent=1 // pred_region
      _
    $region21: #{sublayer_forward.1} parent=1 // pred_fallthru
      _
    // Predicated region
    $region22: #{sublayer_forward.1} parent=1 // pred_check
      _
    $region23: #{sublayer_forward.1} parent=1 // pred_check_branch
      %24 = sbr.rel (0) target = $region25
    $region24: #{sublayer_forward.1} parent=1 // pred_region
      _
    $region25: #{sublayer_forward.1} parent=1 // pred_fallthru
      _
    // Predicated region
    $region26: #{sublayer_forward.1} parent=1 // pred_check
      _
    $region27: #{sublayer_forward.1} parent=1 // pred_check_branch
      %26 = sbr.rel (0) target = $region29
    $region28: #{sublayer_forward.1} parent=1 // pred_region
      _
    $region29: #{sublayer_forward.1} parent=1 // pred_fallthru
      _
    %p28 = scmp.eq.s32.totalorder 0, 0
    // Predicated region
    $region30: #{sublayer_forward.1} parent=1 // pred_check
      %p29 = pneg %p28
    $region31: #{sublayer_forward.1} parent=1 // pred_check_branch
      %31 = sbr.rel (%p29) target = $region33
    $region32: #{sublayer_forward.1} parent=1 // pred_region
      %32 = vst [vmem:[#allocation2] sm:$0xff] 0.0
      %33 = vst [vmem:[#allocation2 + $0x8] sm:$0xff] 0.0
    $region33: #{sublayer_forward.1} parent=1 // pred_fallthru
      _
    %v34 = vld [vmem:[%s0] sm:$0xff]
    %v35 = vld [vmem:[%s0 + $0x8] sm:$0xff]
    %v36 = vpack.c.bf16 %v35, %v34
    %v37 = vld [vmem:[%s1] sm:$0xff]
    %v38 = vld [vmem:[%s1 + $0x8] sm:$0xff]
    %v39 = vld [vmem:[%s1 + $0x10] sm:$0xff]
    %v40 = vld [vmem:[%s1 + $0x18] sm:$0xff]
    %v41 = vld [vmem:[%s1 + $0x20] sm:$0xff]
    %v42 = vld [vmem:[%s1 + $0x28] sm:$0xff]
    %v43 = vld [vmem:[%s1 + $0x30] sm:$0xff]
    %v44 = vld [vmem:[%s1 + $0x38] sm:$0xff]
    %v45 = vld [vmem:[%s1 + $0x40] sm:$0xff]
    %v46 = vld [vmem:[%s1 + $0x48] sm:$0xff]
    %v47 = vld [vmem:[%s1 + $0x50] sm:$0xff]
    %v48 = vld [vmem:[%s1 + $0x58] sm:$0xff]
    %v49 = vld [vmem:[%s1 + $0x60] sm:$0xff]
    %v50 = vld [vmem:[%s1 + $0x68] sm:$0xff]
    %v51 = vld [vmem:[%s1 + $0x70] sm:$0xff]
    %v52 = vld [vmem:[%s1 + $0x78] sm:$0xff]
    %v53 = vld [vmem:[%s2] sm:$0x3]
    %v55 = vlaneseq
    %v56 = vshrl.u32 %v55, 7
    %v57 = vsub.s32 0, %v56
    %v58 = vrot.slane %v53, %v57
    %v59 = vlaneseq
    %v60 = vshrl.u32 %v59, 7
    %v61 = vsub.s32 1, %v60
    %v62 = vrot.slane %v53, %v61
    %v81 = vunpack.c.l.b16 %v37
    %v82 = vunpack.c.h.b16 %v37
    %v83 = vunpack.c.l.b16 %v38
    %v84 = vunpack.c.h.b16 %v38
    %v85 = vunpack.c.l.b16 %v39
    %v86 = vunpack.c.h.b16 %v39
    %v87 = vunpack.c.l.b16 %v40
    %v88 = vunpack.c.h.b16 %v40
    %v89 = vunpack.c.l.b16 %v41
    %v90 = vunpack.c.h.b16 %v41
    %v91 = vunpack.c.l.b16 %v42
    %v92 = vunpack.c.h.b16 %v42
    %v93 = vunpack.c.l.b16 %v43
    %v94 = vunpack.c.h.b16 %v43
    %v95 = vunpack.c.l.b16 %v44
    %v96 = vunpack.c.h.b16 %v44
    %v97 = vunpack.c.l.b16 %v45
    %v98 = vunpack.c.h.b16 %v45
    %v99 = vunpack.c.l.b16 %v46
    %v100 = vunpack.c.h.b16 %v46
    %v101 = vunpack.c.l.b16 %v47
    %v102 = vunpack.c.h.b16 %v47
    %v103 = vunpack.c.l.b16 %v48
    %v104 = vunpack.c.h.b16 %v48
    %v105 = vunpack.c.l.b16 %v49
    %v106 = vunpack.c.h.b16 %v49
    %v107 = vunpack.c.l.b16 %v50
    %v108 = vunpack.c.h.b16 %v50
    %v109 = vunpack.c.l.b16 %v51
    %v110 = vunpack.c.h.b16 %v51
    %v111 = vunpack.c.l.b16 %v52
    %v112 = vunpack.c.h.b16 %v52
    %v113 = vpack.c.b16 %v83, %v81
    %v114 = vpack.c.b16 %v84, %v82
    %v115 = vpack.c.b16 %v87, %v85
    %v116 = vpack.c.b16 %v88, %v86
    %v117 = vpack.c.b16 %v91, %v89
    %v118 = vpack.c.b16 %v92, %v90
    %v119 = vpack.c.b16 %v95, %v93
    %v120 = vpack.c.b16 %v96, %v94
    %v121 = vpack.c.b16 %v99, %v97
    %v122 = vpack.c.b16 %v100, %v98
    %v123 = vpack.c.b16 %v103, %v101
    %v124 = vpack.c.b16 %v104, %v102
    %v125 = vpack.c.b16 %v107, %v105
    %v126 = vpack.c.b16 %v108, %v106
    %v127 = vpack.c.b16 %v111, %v109
    %v128 = vpack.c.b16 %v112, %v110
    %145 = vmatprep.subr.bf16.mxu0 %v114
    %146 = vmatpush1.bf16.msra.mxu0 %v113
    %147 = vmatprep.subr.bf16.mxu0 %v116
    %148 = vmatpush1.bf16.msra.mxu0 %v115
    %149 = vmatprep.subr.bf16.mxu0 %v118
    %150 = vmatpush1.bf16.msra.mxu0 %v117
    %151 = vmatprep.subr.bf16.mxu0 %v120
    %152 = vmatpush1.bf16.msra.mxu0 %v119
    %153 = vmatprep.subr.bf16.mxu0 %v122
    %154 = vmatpush1.bf16.msra.mxu0 %v121
    %155 = vmatprep.subr.bf16.mxu0 %v124
    %156 = vmatpush1.bf16.msra.mxu0 %v123
    %157 = vmatprep.subr.bf16.mxu0 %v126
    %158 = vmatpush1.bf16.msra.mxu0 %v125
    %159 = vmatprep.subr.bf16.mxu0 %v128
    %160 = vmatpush1.bf16.msra.mxu0 %v127
    %161 = vmatprep.subr.bf16.mxu0 0
    %162 = vmatpush1.bf16.msra.mxu0 0
    %163 = vmatprep.subr.bf16.mxu0 0
    %164 = vmatpush1.bf16.msra.mxu0 0
    %165 = vmatprep.subr.bf16.mxu0 0
    %166 = vmatpush1.bf16.msra.mxu0 0
    %167 = vmatprep.subr.bf16.mxu0 0
    %168 = vmatpush1.bf16.msra.mxu0 0
    %169 = vmatprep.subr.bf16.mxu0 0
    %170 = vmatpush1.bf16.msra.mxu0 0
    %171 = vmatprep.subr.bf16.mxu0 0
    %172 = vmatpush1.bf16.msra.mxu0 0
    %173 = vmatprep.subr.bf16.mxu0 0
    %174 = vmatpush1.bf16.msra.mxu0 0
    %175 = vmatprep.subr.bf16.mxu0 0
    %176 = vmatpush1.bf16.msra.mxu0 0
    %177 = vmatprep.mubr.bf16.mxu0 0
    %178 = vmatmul.mubr.bf16.gmra.mrb[0].mxu0 %v36
    %v179 = vpop.f32.mrb[0].mxu0
    %v180 = vadd.f32 %v58, %v179
    %v181 = vpop.f32.mrb[0].mxu0
    %v182 = vadd.f32 %v62, %v181
    %v183 = vpop.f32.mrb[0].mxu0
    %v184 = vadd.f32 %v58, %v183
    %v185 = vpop.f32.mrb[0].mxu0
    %v186 = vadd.f32 %v62, %v185
    %187 = vdwg.mxu0
    %v188 = vmax.f32 %v180, 0.0
    %v189 = vmax.f32 %v182, 0.0
    %v190 = vmax.f32 %v184, 0.0
    %v191 = vmax.f32 %v186, 0.0
    %v192 = vld [vmem:[#allocation2] sm:$0xff]
    %v193 = vld [vmem:[#allocation2 + $0x8] sm:$0xff]
    %v194 = vpack.c.bf16 %v190, %v188
    %v195 = vpack.c.bf16 %v191, %v189
    %v196 = vld [vmem:[%s3] sm:$0xf]
    %v197 = vld [vmem:[%s3 + $0x4] sm:$0xf]
    %v198 = vld [vmem:[%s3 + $0x8] sm:$0xf]
    %v199 = vld [vmem:[%s3 + $0xc] sm:$0xf]
    %v200 = vld [vmem:[%s3 + $0x10] sm:$0xf]
    %v201 = vld [vmem:[%s3 + $0x14] sm:$0xf]
    %v202 = vld [vmem:[%s3 + $0x18] sm:$0xf]
    %v203 = vld [vmem:[%s3 + $0x1c] sm:$0xf]
    %v204 = vld [vmem:[%s3 + $0x20] sm:$0xf]
    %v205 = vld [vmem:[%s3 + $0x24] sm:$0xf]
    %v206 = vld [vmem:[%s3 + $0x28] sm:$0xf]
    %v207 = vld [vmem:[%s3 + $0x2c] sm:$0xf]
    %v208 = vld [vmem:[%s3 + $0x30] sm:$0xf]
    %v209 = vld [vmem:[%s3 + $0x34] sm:$0xf]
    %v210 = vld [vmem:[%s3 + $0x38] sm:$0xf]
    %v211 = vld [vmem:[%s3 + $0x3c] sm:$0xf]
    %v212 = vld [vmem:[%s3 + $0x40] sm:$0xf]
    %v213 = vld [vmem:[%s3 + $0x44] sm:$0xf]
    %v214 = vld [vmem:[%s3 + $0x48] sm:$0xf]
    %v215 = vld [vmem:[%s3 + $0x4c] sm:$0xf]
    %v216 = vld [vmem:[%s3 + $0x50] sm:$0xf]
    %v217 = vld [vmem:[%s3 + $0x54] sm:$0xf]
    %v218 = vld [vmem:[%s3 + $0x58] sm:$0xf]
    %v219 = vld [vmem:[%s3 + $0x5c] sm:$0xf]
    %v220 = vld [vmem:[%s3 + $0x60] sm:$0xf]
    %v221 = vld [vmem:[%s3 + $0x64] sm:$0xf]
    %v222 = vld [vmem:[%s3 + $0x68] sm:$0xf]
    %v223 = vld [vmem:[%s3 + $0x6c] sm:$0xf]
    %v224 = vld [vmem:[%s3 + $0x70] sm:$0xf]
    %v225 = vld [vmem:[%s3 + $0x74] sm:$0xf]
    %v226 = vld [vmem:[%s3 + $0x78] sm:$0xf]
    %v227 = vld [vmem:[%s3 + $0x7c] sm:$0xf]
    %v260 = vunpack.c.l.b16 %v196
    %v261 = vunpack.c.l.b16 %v197
    %v262 = vunpack.c.l.b16 %v198
    %v263 = vunpack.c.l.b16 %v199
    %v264 = vunpack.c.l.b16 %v200
    %v265 = vunpack.c.l.b16 %v201
    %v266 = vunpack.c.l.b16 %v202
    %v267 = vunpack.c.l.b16 %v203
    %v268 = vunpack.c.l.b16 %v204
    %v269 = vunpack.c.l.b16 %v205
    %v270 = vunpack.c.l.b16 %v206
    %v271 = vunpack.c.l.b16 %v207
    %v272 = vunpack.c.l.b16 %v208
    %v273 = vunpack.c.l.b16 %v209
    %v274 = vunpack.c.l.b16 %v210
    %v275 = vunpack.c.l.b16 %v211
    %v276 = vunpack.c.l.b16 %v212
    %v277 = vunpack.c.l.b16 %v213
    %v278 = vunpack.c.l.b16 %v214
    %v279 = vunpack.c.l.b16 %v215
    %v280 = vunpack.c.l.b16 %v216
    %v281 = vunpack.c.l.b16 %v217
    %v282 = vunpack.c.l.b16 %v218
    %v283 = vunpack.c.l.b16 %v219
    %v284 = vunpack.c.l.b16 %v220
    %v285 = vunpack.c.l.b16 %v221
    %v286 = vunpack.c.l.b16 %v222
    %v287 = vunpack.c.l.b16 %v223
    %v288 = vunpack.c.l.b16 %v224
    %v289 = vunpack.c.l.b16 %v225
    %v290 = vunpack.c.l.b16 %v226
    %v291 = vunpack.c.l.b16 %v227
    %v292 = vpack.c.b16 %v261, %v260
    %v293 = vpack.c.b16 %v263, %v262
    %v294 = vpack.c.b16 %v265, %v264
    %v295 = vpack.c.b16 %v267, %v266
    %v296 = vpack.c.b16 %v269, %v268
    %v297 = vpack.c.b16 %v271, %v270
    %v298 = vpack.c.b16 %v273, %v272
    %v299 = vpack.c.b16 %v275, %v274
    %v300 = vpack.c.b16 %v277, %v276
    %v301 = vpack.c.b16 %v279, %v278
    %v302 = vpack.c.b16 %v281, %v280
    %v303 = vpack.c.b16 %v283, %v282
    %v304 = vpack.c.b16 %v285, %v284
    %v305 = vpack.c.b16 %v287, %v286
    %v306 = vpack.c.b16 %v289, %v288
    %v307 = vpack.c.b16 %v291, %v290
    %324 = vmatprep.subr.bf16.mxu0 0
    %325 = vmatpush1.bf16.msra.mxu0 %v292
    %326 = vmatprep.subr.bf16.mxu0 0
    %327 = vmatpush1.bf16.msra.mxu0 %v293
    %328 = vmatprep.subr.bf16.mxu0 0
    %329 = vmatpush1.bf16.msra.mxu0 %v294
    %330 = vmatprep.subr.bf16.mxu0 0
    %331 = vmatpush1.bf16.msra.mxu0 %v295
    %332 = vmatprep.subr.bf16.mxu0 0
    %333 = vmatpush1.bf16.msra.mxu0 %v296
    %334 = vmatprep.subr.bf16.mxu0 0
    %335 = vmatpush1.bf16.msra.mxu0 %v297
    %336 = vmatprep.subr.bf16.mxu0 0
    %337 = vmatpush1.bf16.msra.mxu0 %v298
    %338 = vmatprep.subr.bf16.mxu0 0
    %339 = vmatpush1.bf16.msra.mxu0 %v299
    %340 = vmatprep.subr.bf16.mxu0 0
    %341 = vmatpush1.bf16.msra.mxu0 %v300
    %342 = vmatprep.subr.bf16.mxu0 0
    %343 = vmatpush1.bf16.msra.mxu0 %v301
    %344 = vmatprep.subr.bf16.mxu0 0
    %345 = vmatpush1.bf16.msra.mxu0 %v302
    %346 = vmatprep.subr.bf16.mxu0 0
    %347 = vmatpush1.bf16.msra.mxu0 %v303
    %348 = vmatprep.subr.bf16.mxu0 0
    %349 = vmatpush1.bf16.msra.mxu0 %v304
    %350 = vmatprep.subr.bf16.mxu0 0
    %351 = vmatpush1.bf16.msra.mxu0 %v305
    %352 = vmatprep.subr.bf16.mxu0 0
    %353 = vmatpush1.bf16.msra.mxu0 %v306
    %354 = vmatprep.subr.bf16.mxu0 0
    %355 = vmatpush1.bf16.msra.mxu0 %v307
    %356 = vmatprep.mubr.bf16.mxu0 %v195
    %357 = vmatmul.mubr.bf16.gmra.mrb[0].mxu0 %v194
    %v358 = vpop.f32.mrb[0].mxu0
    %v359 = vadd.f32 0.0, %v358
    %v360 = vpop.f32.mrb[0].mxu0
    %v361 = vpop.f32.mrb[0].mxu0
    %v362 = vadd.f32 0.0, %v361
    %v363 = vpop.f32.mrb[0].mxu0
    %364 = vdwg.mxu0
    %v365 = vadd.f32 %v192, %v359
    %v366 = vadd.f32 %v193, %v362
    %367 = vst [vmem:[#allocation2] sm:$0xff] %v365
    %368 = vst [vmem:[#allocation2 + $0x8] sm:$0xff] %v366
    // Predicated region
    $region34: #{sublayer_forward.1} parent=1 // pred_check
      %p369 = pneg %p28
    $region35: #{sublayer_forward.1} parent=1 // pred_check_branch
      %371 = sbr.rel (%p369) target = $region37
    $region36: #{sublayer_forward.1} parent=1 // pred_region
      %v372 = vld [vmem:[%s0] sm:$0xff]
      %v373 = vld [vmem:[%s0 + $0x8] sm:$0xff]
      %v374 = vld [vmem:[#allocation2] sm:$0xff]
      %v375 = vld [vmem:[#allocation2 + $0x8] sm:$0xff]
      %v376 = vadd.f32 %v372, %v374
      %v377 = vadd.f32 %v373, %v375
      %v378 = vld [vmem:[%s4] sm:$0x1]
      %v380 = vlaneseq
      %v381 = vshrl.u32 %v380, 7
      %v382 = vsub.s32 0, %v381
      %v383 = vrot.slane %v378, %v382
      %v385 = vadd.f32 %v376, %v383
      %v386 = vadd.f32 %v377, %v383
      %387 = vadd.xlane.f32.xlu0 %v385
      %v388 = vpop.xlane.xlu0 %387
      %389 = vadd.xlane.f32.xlu0 %v386
      %v390 = vpop.xlane.xlu0 %389
      %v391 = vrcp.pop 128.0
      %v392 = vmul.f32 %v388, %v391
      %v393 = vmul.f32 %v390, %v391
      %v394 = vsub.f32 %v385, %v392
      %v395 = vsub.f32 %v386, %v393
      %v396 = vmul.f32 %v394, %v394
      %v397 = vmul.f32 %v395, %v395
      %398 = vadd.xlane.f32.xlu0 %v396
      %v399 = vpop.xlane.xlu0 %398
      %400 = vadd.xlane.f32.xlu0 %v397
      %v401 = vpop.xlane.xlu0 %400
      %v402 = vmul.f32 %v399, %v391
      %v403 = vmul.f32 %v401, %v391
      %v404 = vadd.f32 %v402, 1e-05
      %v405 = vadd.f32 %v403, 1e-05
      %v406 = vrsqrt.pop %v404
      %v407 = vrsqrt.pop %v405
      %v408 = vmul.f32 %v394, %v406
      %v409 = vmul.f32 %v395, %v407
      %v410 = vld [vmem:[%s5] sm:$0x1]
      %v412 = vlaneseq
      %v413 = vshrl.u32 %v412, 7
      %v414 = vsub.s32 0, %v413
      %v415 = vrot.slane %v410, %v414
      %v417 = vmul.f32 %v408, %v415
      %v418 = vmul.f32 %v409, %v415
      %v419 = vld [vmem:[%s6] sm:$0x1]
      %v421 = vlaneseq
      %v422 = vshrl.u32 %v421, 7
      %v423 = vsub.s32 0, %v422
      %v424 = vrot.slane %v419, %v423
      %v426 = vadd.f32 %v417, %v424
      %v427 = vadd.f32 %v418, %v424
      %428 = vst [vmem:[#allocation3] sm:$0xff] %v426
      %429 = vst [vmem:[#allocation3 + $0x8] sm:$0xff] %v427
    $region37: #{sublayer_forward.1} parent=1 // pred_fallthru
      _
    // Predicated region
    $region38: #{sublayer_forward.1} parent=1 // pred_check
      _
    $region39: #{sublayer_forward.1} parent=1 // pred_check_branch
      %431 = sbr.rel (0) target = $region41
    $region40: #{sublayer_forward.1} parent=1 // pred_region
      %s433 = ssub.s32 256, 256
      %434 = vsyncadd [#allocation4], %s433
      %s435 = sshll.u32 [#allocation3], 4
      %s436 = int_to_ptr.vmem [resolvable:$true] %s435
      %441 = dma.vmem_to_hbm [thread:$0]  %s436, 256, %s7, [#allocation4], 128, 128, 8
    $region41: #{sublayer_forward.1} parent=1 // pred_fallthru
      _
    // Predicated region
    $region42: #{sublayer_forward.1} parent=1 // pred_check
      _
    $region43: #{sublayer_forward.1} parent=1 // pred_check_branch
      %443 = sbr.rel (0) target = $region45
    $region44: #{sublayer_forward.1} parent=1 // pred_region
      %444 = dma.done [#allocation4], 256
    $region45: #{sublayer_forward.1} parent=1 // pred_fallthru
      _
    %445 = vsyncpa [#allocation4], 1

</llo_original>
